<compile_context>
chip_gen: v6e
topology: v6e:2x2x1
jax: 0.10.0
libtpu: 0.0.40
codegen_flags: <defaults>
</compile_context>

<pallas_src>
import jax
import jax.numpy as jnp
import numpy as np
from jax.experimental import pallas as pl
from jax.experimental.pallas import tpu as pltpu


def _round_up(x, m):
    return (x + m - 1) // m * m


def lift_kernel(x_ref, w_in_ref, b_in_ref, w_blk_ref, b_blk_ref,
                w_out_ref, b_out_ref, o_ref):
    # input_map: Linear(input_nodes, hidden)   (bf16 weights, f32 accumulate)
    h = jnp.dot(x_ref[...].astype(jnp.bfloat16), w_in_ref[...],
                preferred_element_type=jnp.float32) + b_in_ref[...]

    n_blocks = w_blk_ref.shape[0]
    for blk in range(n_blocks):            # static python loop -> fully unrolled
        y = h
        for layer in range(2):             # layer1 / layer2 of ResidualBlock
            # Linear with BatchNorm(eval) affine pre-folded into weight/bias.
            y = jnp.dot(y.astype(jnp.bfloat16), w_blk_ref[blk, layer],
                        preferred_element_type=jnp.float32) + b_blk_ref[blk, layer]
            y = jnp.maximum(y, 0.0)        # ReLU; Dropout is identity in eval mode.
        h = h + y                          # residual connection

    # output_map: Linear(hidden, output_nodes) — columns pre-padded to 128 lanes.
    o_ref[...] = (jnp.dot(h.astype(jnp.bfloat16), w_out_ref[...],
                          preferred_element_type=jnp.float32)
                  + b_out_ref[...]).astype(o_ref.dtype)


def _prepare_kernel_params(params, out_pad):
    """Fold BN affine + bias into residual weights, cast weights to bf16, pad output."""
    (w_in, b_in, w_blk, b_blk, s_blk, t_blk, w_out, b_out) = params
    # (x @ w + b) * s + t  ==  x @ (w * s) + (b * s + t)   (column-wise scale)
    w_blk_f = w_blk * s_blk                      # (n,2,h,h) * (n,2,1,h)
    b_blk_f = b_blk * s_blk + t_blk              # (n,2,1,h)

    out_nodes = w_out.shape[1]
    pad = out_pad - out_nodes
    w_out_p = jnp.pad(w_out, ((0, 0), (0, pad)))
    b_out_p = jnp.pad(b_out, ((0, 0), (0, pad)))

    return (w_in.astype(jnp.bfloat16),
            b_in.astype(jnp.float32),
            w_blk_f.astype(jnp.bfloat16),
            b_blk_f.astype(jnp.float32),
            w_out_p.astype(jnp.bfloat16),
            b_out_p.astype(jnp.float32))


def lift_forward(poses, params, *, max_tb=512):
    """poses: (B, n_joints, 2) float32 -> (B, output_nodes // 3, 3)."""
    (w_in, _, _, _, _, _, w_out, _) = params
    B = poses.shape[0]
    out_nodes = w_out.shape[1]
    out_pad = _round_up(out_nodes, 128)          # lane-dense output stores

    (w_in_b, b_in_f, w_blk_b, b_blk_f,
     w_out_b, b_out_f) = _prepare_kernel_params(params, out_pad)

    x = poses.reshape(B, -1).astype(jnp.float32)  # glue: poses.view(B, -1)
    in_nodes = x.shape[1]

    # Batch tile: multiple of 8 sublanes, capped so activation tiles stay tiny
    # relative to v7x's 32 MiB scoped VMEM even when double-buffered.
    tb = min(max_tb, _round_up(B, 8))
    bp = _round_up(B, tb)
    if bp != B:
        x = jnp.pad(x, ((0, bp - B), (0, 0)))

    def const_spec(arr):
        nd = arr.ndim
        return pl.BlockSpec(arr.shape, lambda i, nd=nd: (0,) * nd)

    out = pl.pallas_call(
        lift_kernel,
        out_shape=jax.ShapeDtypeStruct((bp, out_pad), jnp.float32),
        grid_spec=pltpu.PrefetchScalarGridSpec(
            num_scalar_prefetch=0,
            grid=(bp // tb,),
            in_specs=[
                pl.BlockSpec((tb, in_nodes), lambda i: (i, 0)),  # streamed x tile
                const_spec(w_in_b),                              # weights: VMEM-resident
                const_spec(b_in_f),
                const_spec(w_blk_b),
                const_spec(b_blk_f),
                const_spec(w_out_b),
                const_spec(b_out_f),
            ],
            out_specs=pl.BlockSpec((tb, out_pad), lambda i: (i, 0)),
        ),
        compiler_params=pltpu.CompilerParams(
            dimension_semantics=("parallel",)),
    )(x, w_in_b, b_in_f, w_blk_b, b_blk_f, w_out_b, b_out_f)

    # glue: drop batch padding, drop lane padding, .view(B, -1, 3)
    return out[:B, :out_nodes].reshape(B, -1, 3)


def init_params(key, n_blocks=2, hidden=256, output_nodes=45, eps=1e-5):
    """Deterministic synthetic parameters (PyTorch Linear-style uniform init)."""
    input_nodes = int(output_nodes * 2 / 3)
    ks = jax.random.split(key, 2 + 2 * n_blocks * 2)

    def lin(k, fan_in, fan_out):
        bound = 1.0 / np.sqrt(fan_in)
        kw, kb = jax.random.split(k)
        w = jax.random.uniform(kw, (fan_in, fan_out), jnp.float32, -bound, bound)
        b = jax.random.uniform(kb, (1, fan_out), jnp.float32, -bound, bound)
        return w, b

    w_in, b_in = lin(ks[0], input_nodes, hidden)
    w_out, b_out = lin(ks[1], hidden, output_nodes)

    w_blk, b_blk, s_blk, t_blk = [], [], [], []
    idx = 2
    for _ in range(n_blocks):
        wrow, brow, srow, trow = [], [], [], []
        for _ in range(2):
            w, b = lin(ks[idx], hidden, hidden); idx += 1
            kg, kb2, km, kv = jax.random.split(ks[idx], 4); idx += 1
            gamma = 1.0 + 0.1 * jax.random.normal(kg, (hidden,), jnp.float32)
            beta = 0.1 * jax.random.normal(kb2, (hidden,), jnp.float32)
            mean = 0.1 * jax.random.normal(km, (hidden,), jnp.float32)
            var = jnp.abs(1.0 + 0.1 * jax.random.normal(kv, (hidden,), jnp.float32))
            scale = gamma * jax.lax.rsqrt(var + eps)
            shift = beta - mean * scale
            wrow.append(w); brow.append(b)
            srow.append(scale.reshape(1, hidden)); trow.append(shift.reshape(1, hidden))
        w_blk.append(jnp.stack(wrow)); b_blk.append(jnp.stack(brow))
        s_blk.append(jnp.stack(srow)); t_blk.append(jnp.stack(trow))

    return (w_in, b_in, jnp.stack(w_blk), jnp.stack(b_blk),
            jnp.stack(s_blk), jnp.stack(t_blk), w_out, b_out)


def lift_reference(poses, params):
    """Pure-JAX f32 reference of the same eval-mode forward (BN affine kept separate)."""
    (w_in, b_in, w_blk, b_blk, s_blk, t_blk, w_out, b_out) = params
    B = poses.shape[0]
    h = poses.reshape(B, -1).astype(jnp.float32) @ w_in + b_in
    for blk in range(w_blk.shape[0]):
        y = h
        for l in range(2):
            y = y @ w_blk[blk, l] + b_blk[blk, l]
            y = y * s_blk[blk, l] + t_blk[blk, l]
            y = jnp.maximum(y, 0.0)
        h = h + y
    return (h @ w_out + b_out).reshape(B, -1, 3)


if __name__ == "__main__":
    key = jax.random.PRNGKey(0)
    kp, kx = jax.random.split(key)

    B, n_blocks, hidden, output_nodes = 8, 2, 256, 45   # input_nodes = 30 -> poses (B, 15, 2)
    params = init_params(kp, n_blocks=n_blocks, hidden=hidden, output_nodes=output_nodes)
    poses = jax.random.normal(kx, (B, output_nodes // 3, 2), jnp.float32)

    out = jax.block_until_ready(lift_forward(poses, params))
    ref = lift_reference(poses, params)

    assert out.shape == (B, output_nodes // 3, 3), out.shape
    # bf16 weights with f32 accumulation: allow small drift vs. the f32 reference.
    np.testing.assert_allclose(np.asarray(out), np.asarray(ref), rtol=2e-2, atol=2e-2)
    print("KERNEL_OK")
</pallas_src>

<mosaic_0001>
module attributes {stable_mosaic.version = 11 : i64} {
  func.func @lift_kernel(%arg0: i32, %arg1: memref<8x30xf32, #tpu.memory_space<vmem>>, %arg2: memref<30x256xbf16, #tpu.memory_space<vmem>>, %arg3: memref<1x256xf32, #tpu.memory_space<vmem>>, %arg4: memref<2x2x256x256xbf16, #tpu.memory_space<vmem>>, %arg5: memref<2x2x1x256xf32, #tpu.memory_space<vmem>>, %arg6: memref<256x128xbf16, #tpu.memory_space<vmem>>, %arg7: memref<1x128xf32, #tpu.memory_space<vmem>>, %arg8: memref<8x128xf32, #tpu.memory_space<vmem>>) attributes {dimension_semantics = [#tpu.dimension_semantics<parallel>], iteration_bounds = array<i64: 1>, scalar_prefetch = 0 : i64, scratch_operands = 0 : i64, tpu.core_type = #tpu.core_type<tc>, window_params = [{transform_indices = @transform_0, window_bounds = array<i64: 8, 30>}, {pipeline_mode = #tpu.pipeline_mode<synchronous>, transform_indices = @transform_1, window_bounds = array<i64: 30, 256>}, {pipeline_mode = #tpu.pipeline_mode<synchronous>, transform_indices = @transform_2, window_bounds = array<i64: 1, 256>}, {pipeline_mode = #tpu.pipeline_mode<synchronous>, transform_indices = @transform_3, window_bounds = array<i64: 2, 2, 256, 256>}, {pipeline_mode = #tpu.pipeline_mode<synchronous>, transform_indices = @transform_4, window_bounds = array<i64: 2, 2, 1, 256>}, {pipeline_mode = #tpu.pipeline_mode<synchronous>, transform_indices = @transform_5, window_bounds = array<i64: 256, 128>}, {pipeline_mode = #tpu.pipeline_mode<synchronous>, transform_indices = @transform_6, window_bounds = array<i64: 1, 128>}, {transform_indices = @transform_7, window_bounds = array<i64: 8, 128>}]} {
    %c0 = arith.constant 0 : index
    %c0_0 = arith.constant 0 : index
    %0 = vector.load %arg1[%c0, %c0_0] : memref<8x30xf32, #tpu.memory_space<vmem>>, vector<8x30xf32>
    %1 = arith.truncf %0 : vector<8x30xf32> to vector<8x30xbf16>
    %c0_1 = arith.constant 0 : index
    %c0_2 = arith.constant 0 : index
    %2 = vector.load %arg2[%c0_1, %c0_2] : memref<30x256xbf16, #tpu.memory_space<vmem>>, vector<30x256xbf16>
    %cst = arith.constant dense<0.000000e+00> : vector<8x256xf32>
    %3 = tpu.matmul %1, %2, %cst {dimension_numbers = #tpu.dot_dimension_numbers<[1], [0], [0], [1], [0, 0, 1, 1], [], []>} : vector<8x30xbf16>, vector<30x256xbf16>, vector<8x256xf32> -> vector<8x256xf32>
    %c0_3 = arith.constant 0 : index
    %c0_4 = arith.constant 0 : index
    %4 = vector.load %arg3[%c0_3, %c0_4] : memref<1x256xf32, #tpu.memory_space<vmem>>, vector<1x256xf32>
    %5 = vector.broadcast %4 : vector<1x256xf32> to vector<8x256xf32>
    %6 = arith.addf %3, %5 : vector<8x256xf32>
    %7 = arith.truncf %6 : vector<8x256xf32> to vector<8x256xbf16>
    %c0_5 = arith.constant 0 : index
    %c0_6 = arith.constant 0 : index
    %c0_7 = arith.constant 0 : index
    %c0_8 = arith.constant 0 : index
    %8 = vector.load %arg4[%c0_5, %c0_6, %c0_7, %c0_8] : memref<2x2x256x256xbf16, #tpu.memory_space<vmem>>, vector<1x1x256x256xbf16>
    %9 = vector.shape_cast %8 : vector<1x1x256x256xbf16> to vector<256x256xbf16>
    %cst_9 = arith.constant dense<0.000000e+00> : vector<8x256xf32>
    %10 = tpu.matmul %7, %9, %cst_9 {dimension_numbers = #tpu.dot_dimension_numbers<[1], [0], [0], [1], [0, 0, 1, 1], [], []>} : vector<8x256xbf16>, vector<256x256xbf16>, vector<8x256xf32> -> vector<8x256xf32>
    %c0_10 = arith.constant 0 : index
    %c0_11 = arith.constant 0 : index
    %c0_12 = arith.constant 0 : index
    %c0_13 = arith.constant 0 : index
    %11 = vector.load %arg5[%c0_10, %c0_11, %c0_12, %c0_13] : memref<2x2x1x256xf32, #tpu.memory_space<vmem>>, vector<1x1x1x256xf32>
    %12 = vector.shape_cast %11 : vector<1x1x1x256xf32> to vector<1x256xf32>
    %13 = vector.broadcast %12 : vector<1x256xf32> to vector<8x256xf32>
    %14 = arith.addf %10, %13 : vector<8x256xf32>
    %cst_14 = arith.constant 0.000000e+00 : f32
    %15 = vector.broadcast %cst_14 : f32 to vector<8x256xf32>
    %16 = arith.maximumf %14, %15 : vector<8x256xf32>
    %17 = arith.truncf %16 : vector<8x256xf32> to vector<8x256xbf16>
    %c0_15 = arith.constant 0 : index
    %c1 = arith.constant 1 : index
    %c0_16 = arith.constant 0 : index
    %c0_17 = arith.constant 0 : index
    %18 = vector.load %arg4[%c0_15, %c1, %c0_16, %c0_17] : memref<2x2x256x256xbf16, #tpu.memory_space<vmem>>, vector<1x1x256x256xbf16>
    %19 = vector.shape_cast %18 : vector<1x1x256x256xbf16> to vector<256x256xbf16>
    %cst_18 = arith.constant dense<0.000000e+00> : vector<8x256xf32>
    %20 = tpu.matmul %17, %19, %cst_18 {dimension_numbers = #tpu.dot_dimension_numbers<[1], [0], [0], [1], [0, 0, 1, 1], [], []>} : vector<8x256xbf16>, vector<256x256xbf16>, vector<8x256xf32> -> vector<8x256xf32>
    %c0_19 = arith.constant 0 : index
    %c1_20 = arith.constant 1 : index
    %c0_21 = arith.constant 0 : index
    %c0_22 = arith.constant 0 : index
    %21 = vector.load %arg5[%c0_19, %c1_20, %c0_21, %c0_22] : memref<2x2x1x256xf32, #tpu.memory_space<vmem>>, vector<1x1x1x256xf32>
    %22 = vector.shape_cast %21 : vector<1x1x1x256xf32> to vector<1x256xf32>
    %23 = vector.broadcast %22 : vector<1x256xf32> to vector<8x256xf32>
    %24 = arith.addf %20, %23 : vector<8x256xf32>
    %cst_23 = arith.constant 0.000000e+00 : f32
    %25 = vector.broadcast %cst_23 : f32 to vector<8x256xf32>
    %26 = arith.maximumf %24, %25 : vector<8x256xf32>
    %27 = arith.addf %6, %26 : vector<8x256xf32>
    %28 = arith.truncf %27 : vector<8x256xf32> to vector<8x256xbf16>
    %c1_24 = arith.constant 1 : index
    %c0_25 = arith.constant 0 : index
    %c0_26 = arith.constant 0 : index
    %c0_27 = arith.constant 0 : index
    %29 = vector.load %arg4[%c1_24, %c0_25, %c0_26, %c0_27] : memref<2x2x256x256xbf16, #tpu.memory_space<vmem>>, vector<1x1x256x256xbf16>
    %30 = vector.shape_cast %29 : vector<1x1x256x256xbf16> to vector<256x256xbf16>
    %cst_28 = arith.constant dense<0.000000e+00> : vector<8x256xf32>
    %31 = tpu.matmul %28, %30, %cst_28 {dimension_numbers = #tpu.dot_dimension_numbers<[1], [0], [0], [1], [0, 0, 1, 1], [], []>} : vector<8x256xbf16>, vector<256x256xbf16>, vector<8x256xf32> -> vector<8x256xf32>
    %c1_29 = arith.constant 1 : index
    %c0_30 = arith.constant 0 : index
    %c0_31 = arith.constant 0 : index
    %c0_32 = arith.constant 0 : index
    %32 = vector.load %arg5[%c1_29, %c0_30, %c0_31, %c0_32] : memref<2x2x1x256xf32, #tpu.memory_space<vmem>>, vector<1x1x1x256xf32>
    %33 = vector.shape_cast %32 : vector<1x1x1x256xf32> to vector<1x256xf32>
    %34 = vector.broadcast %33 : vector<1x256xf32> to vector<8x256xf32>
    %35 = arith.addf %31, %34 : vector<8x256xf32>
    %cst_33 = arith.constant 0.000000e+00 : f32
    %36 = vector.broadcast %cst_33 : f32 to vector<8x256xf32>
    %37 = arith.maximumf %35, %36 : vector<8x256xf32>
    %38 = arith.truncf %37 : vector<8x256xf32> to vector<8x256xbf16>
    %c1_34 = arith.constant 1 : index
    %c1_35 = arith.constant 1 : index
    %c0_36 = arith.constant 0 : index
    %c0_37 = arith.constant 0 : index
    %39 = vector.load %arg4[%c1_34, %c1_35, %c0_36, %c0_37] : memref<2x2x256x256xbf16, #tpu.memory_space<vmem>>, vector<1x1x256x256xbf16>
    %40 = vector.shape_cast %39 : vector<1x1x256x256xbf16> to vector<256x256xbf16>
    %cst_38 = arith.constant dense<0.000000e+00> : vector<8x256xf32>
    %41 = tpu.matmul %38, %40, %cst_38 {dimension_numbers = #tpu.dot_dimension_numbers<[1], [0], [0], [1], [0, 0, 1, 1], [], []>} : vector<8x256xbf16>, vector<256x256xbf16>, vector<8x256xf32> -> vector<8x256xf32>
    %c1_39 = arith.constant 1 : index
    %c1_40 = arith.constant 1 : index
    %c0_41 = arith.constant 0 : index
    %c0_42 = arith.constant 0 : index
    %42 = vector.load %arg5[%c1_39, %c1_40, %c0_41, %c0_42] : memref<2x2x1x256xf32, #tpu.memory_space<vmem>>, vector<1x1x1x256xf32>
    %43 = vector.shape_cast %42 : vector<1x1x1x256xf32> to vector<1x256xf32>
    %44 = vector.broadcast %43 : vector<1x256xf32> to vector<8x256xf32>
    %45 = arith.addf %41, %44 : vector<8x256xf32>
    %cst_43 = arith.constant 0.000000e+00 : f32
    %46 = vector.broadcast %cst_43 : f32 to vector<8x256xf32>
    %47 = arith.maximumf %45, %46 : vector<8x256xf32>
    %48 = arith.addf %27, %47 : vector<8x256xf32>
    %49 = arith.truncf %48 : vector<8x256xf32> to vector<8x256xbf16>
    %c0_44 = arith.constant 0 : index
    %c0_45 = arith.constant 0 : index
    %50 = vector.load %arg6[%c0_44, %c0_45] : memref<256x128xbf16, #tpu.memory_space<vmem>>, vector<256x128xbf16>
    %cst_46 = arith.constant dense<0.000000e+00> : vector<8x128xf32>
    %51 = tpu.matmul %49, %50, %cst_46 {dimension_numbers = #tpu.dot_dimension_numbers<[1], [0], [0], [1], [0, 0, 1, 1], [], []>} : vector<8x256xbf16>, vector<256x128xbf16>, vector<8x128xf32> -> vector<8x128xf32>
    %c0_47 = arith.constant 0 : index
    %c0_48 = arith.constant 0 : index
    %52 = vector.load %arg7[%c0_47, %c0_48] : memref<1x128xf32, #tpu.memory_space<vmem>>, vector<1x128xf32>
    %53 = vector.broadcast %52 : vector<1x128xf32> to vector<8x128xf32>
    %54 = arith.addf %51, %53 : vector<8x128xf32>
    %c0_49 = arith.constant 0 : index
    %c0_50 = arith.constant 0 : index
    %55 = vector.load %arg8[%c0_49, %c0_50] : memref<8x128xf32, #tpu.memory_space<vmem>>, vector<8x128xf32>
    tpu.vector_store %arg8[%c0_49, %c0_50], %54 {strides = array<i32>} : memref<8x128xf32, #tpu.memory_space<vmem>>, vector<8x128xf32>,
    return
  }
  func.func @transform_0(%arg0: i32) -> (i32, i32) {
    %c0_i32 = arith.constant 0 : i32
    %c0_i32_0 = arith.constant 0 : i32
    return %arg0, %c0_i32 : i32, i32
  }
  func.func @transform_1(%arg0: i32) -> (i32, i32) {
    %c0_i32 = arith.constant 0 : i32
    %c0_i32_0 = arith.constant 0 : i32
    %c0_i32_1 = arith.constant 0 : i32
    return %c0_i32, %c0_i32_0 : i32, i32
  }
  func.func @transform_2(%arg0: i32) -> (i32, i32) {
    %c0_i32 = arith.constant 0 : i32
    %c0_i32_0 = arith.constant 0 : i32
    %c0_i32_1 = arith.constant 0 : i32
    return %c0_i32, %c0_i32_0 : i32, i32
  }
  func.func @transform_3(%arg0: i32) -> (i32, i32, i32, i32) {
    %c0_i32 = arith.constant 0 : i32
    %c0_i32_0 = arith.constant 0 : i32
    %c0_i32_1 = arith.constant 0 : i32
    %c0_i32_2 = arith.constant 0 : i32
    %c0_i32_3 = arith.constant 0 : i32
    return %c0_i32, %c0_i32_0, %c0_i32_1, %c0_i32_2 : i32, i32, i32, i32
  }
  func.func @transform_4(%arg0: i32) -> (i32, i32, i32, i32) {
    %c0_i32 = arith.constant 0 : i32
    %c0_i32_0 = arith.constant 0 : i32
    %c0_i32_1 = arith.constant 0 : i32
    %c0_i32_2 = arith.constant 0 : i32
    %c0_i32_3 = arith.constant 0 : i32
    return %c0_i32, %c0_i32_0, %c0_i32_1, %c0_i32_2 : i32, i32, i32, i32
  }
  func.func @transform_5(%arg0: i32) -> (i32, i32) {
    %c0_i32 = arith.constant 0 : i32
    %c0_i32_0 = arith.constant 0 : i32
    %c0_i32_1 = arith.constant 0 : i32
    return %c0_i32, %c0_i32_0 : i32, i32
  }
  func.func @transform_6(%arg0: i32) -> (i32, i32) {
    %c0_i32 = arith.constant 0 : i32
    %c0_i32_0 = arith.constant 0 : i32
    %c0_i32_1 = arith.constant 0 : i32
    return %c0_i32, %c0_i32_0 : i32, i32
  }
  func.func @transform_7(%arg0: i32) -> (i32, i32) {
    %c0_i32 = arith.constant 0 : i32
    %c0_i32_0 = arith.constant 0 : i32
    return %arg0, %c0_i32 : i32, i32
  }
}

</mosaic_0001>

<llo_original>
// kernel: tpu_custom_call.1
$region0: #{tpu_custom_call.1}
  #allocation0 [shape = 'u32[]', space=smem, size = 0x4, offset = 0x4, fixed_abs, tag = 'smem constant byte address 0x4 - core index']
  #allocation1 [shape = 'u32[144,128]{1,0:T(1,128)}', space=vmem, size = 0x12000, scoped, tag = 'internal scratch']
  %s0 = inlined_call_operand.hbm [shape: f32[8,30], index: 0, kind: input, shape index: {}]
  %s1 = inlined_call_operand.hbm [shape: bf16[30,256], index: 1, kind: input, shape index: {}]
  %s2 = inlined_call_operand.vmem [shape: f32[1,256], index: 2, kind: input, shape index: {}]
  %s3 = inlined_call_operand.hbm [shape: bf16[2,2,256,256], index: 3, kind: input, shape index: {}]
  %s4 = inlined_call_operand.hbm [shape: f32[2,2,1,256], index: 4, kind: input, shape index: {}]
  %s5 = inlined_call_operand.hbm [shape: bf16[256,128], index: 5, kind: input, shape index: {}]
  %s6 = inlined_call_operand.vmem [shape: f32[1,128], index: 6, kind: input, shape index: {}]
  %s7 = inlined_call_operand.hbm [shape: f32[8,128], index: 7, kind: output, shape index: {}]
  %s8 = sld [smem:[#allocation0]]
  $region58: #{tpu_custom_call.1} parent=0
    _
  %s10 = ssub.s32 1, %s8
  %s11 = scalar_select 0, %s10, %s8
  $region1: #{tpu_custom_call.1} parent=0
    #allocation2 [shape = 'u8[4096]{0}', space=vmem, size = 0x1000, scoped, tag = 'input window, operand 0, single buffered']
    #allocation3 [shape = 's32[1]{0}', space=sflag, size = 0x4, scoped, tag = 'scoped memory for tpu_custom_call.1']
    #allocation4 [shape = 's32[1]{0}', space=sflag, size = 0x4, scoped, tag = 'scoped memory for tpu_custom_call.1']
    #allocation5 [shape = 'u8[16384]{0}', space=vmem, size = 0x4000, scoped, tag = 'input window, operand 1, single buffered']
    #allocation6 [shape = 's32[1]{0}', space=sflag, size = 0x4, scoped, tag = 'scoped memory for tpu_custom_call.1']
    #allocation7 [shape = 'u8[524288]{0}', space=vmem, size = 0x80000, scoped, tag = 'input window, operand 3, single buffered']
    #allocation8 [shape = 'u8[4096]{0}', space=vmem, size = 0x1000, scoped, tag = 'input window, operand 4, single buffered']
    #allocation9 [shape = 's32[1]{0}', space=sflag, size = 0x4, scoped, tag = 'scoped memory for tpu_custom_call.1']
    #allocation10 [shape = 'u8[65536]{0}', space=vmem, size = 0x10000, scoped, tag = 'input window, operand 5, single buffered']
    #allocation11 [shape = 'u8[4096]{0}', space=vmem, size = 0x1000, scoped, tag = 'output window, operand 0, single buffered']
    %12 = vsyncpa [#allocation3], 0
    %13 = vsyncpa [#allocation6], 0
    %14 = vsyncpa [#allocation9], 0
    %15 = vsyncpa [#allocation4], 0
    // Predicated region
    $region2: #{tpu_custom_call.1} parent=1 // pred_check
      _
    $region3: #{tpu_custom_call.1} parent=1 // pred_check_branch
      %17 = sbr.rel (0) target = $region5
    $region4: #{tpu_custom_call.1} parent=1 // pred_region
      %s19 = ssub.s32 128, 128
      %20 = vsyncadd [#allocation3], %s19
      %s22 = sshll.u32 [#allocation2], 4
      %s23 = int_to_ptr.vmem [resolvable:$true] %s22
      %25 = dma.hbm_to_vmem [thread:$0]  %s0, 128, %s23, [#allocation3]
    $region5: #{tpu_custom_call.1} parent=1 // pred_fallthru
      _
    // Predicated region
    $region6: #{tpu_custom_call.1} parent=1 // pred_check
      _
    $region7: #{tpu_custom_call.1} parent=1 // pred_check_branch
      %27 = sbr.rel (0) target = $region9
    $region8: #{tpu_custom_call.1} parent=1 // pred_region
      %s29 = ssub.s32 512, 512
      %30 = vsyncadd [#allocation6], %s29
      %s31 = sshll.u32 [#allocation5], 4
      %s32 = int_to_ptr.vmem [resolvable:$true] %s31
      %37 = dma.hbm_to_vmem [thread:$0]  %s1, 512, %s32, [#allocation6], 128, 128, 8
    $region9: #{tpu_custom_call.1} parent=1 // pred_fallthru
      _
    // Predicated region
    $region10: #{tpu_custom_call.1} parent=1 // pred_check
      _
    $region11: #{tpu_custom_call.1} parent=1 // pred_check_branch
      %39 = sbr.rel (0) target = $region13
    $region12: #{tpu_custom_call.1} parent=1 // pred_region
      _
    $region13: #{tpu_custom_call.1} parent=1 // pred_fallthru
      _
    // Predicated region
    $region14: #{tpu_custom_call.1} parent=1 // pred_check
      _
    $region15: #{tpu_custom_call.1} parent=1 // pred_check_branch
      %41 = sbr.rel (0) target = $region17
    $region16: #{tpu_custom_call.1} parent=1 // pred_region
      %s43 = ssub.s32 16384, 16384
      %44 = vsyncadd [#allocation6], %s43
      %s45 = sshll.u32 [#allocation7], 4
      %s46 = int_to_ptr.vmem [resolvable:$true] %s45
      %51 = dma.hbm_to_vmem [thread:$0]  %s3, 16384, %s46, [#allocation6], 128, 128, 8
    $region17: #{tpu_custom_call.1} parent=1 // pred_fallthru
      _
    // Predicated region
    $region18: #{tpu_custom_call.1} parent=1 // pred_check
      _
    $region19: #{tpu_custom_call.1} parent=1 // pred_check_branch
      %53 = sbr.rel (0) target = $region21
    $region20: #{tpu_custom_call.1} parent=1 // pred_region
      %s55 = ssub.s32 128, 128
      %56 = vsyncadd [#allocation9], %s55
      %s57 = sshll.u32 [#allocation8], 4
      %s58 = int_to_ptr.vmem [resolvable:$true] %s57
      %63 = dma.hbm_to_vmem [thread:$0]  %s4, 128, %s58, [#allocation9], 32, 32, 2
    $region21: #{tpu_custom_call.1} parent=1 // pred_fallthru
      _
    // Predicated region
    $region22: #{tpu_custom_call.1} parent=1 // pred_check
      _
    $region23: #{tpu_custom_call.1} parent=1 // pred_check_branch
      %65 = sbr.rel (0) target = $region25
    $region24: #{tpu_custom_call.1} parent=1 // pred_region
      %s67 = ssub.s32 2048, 2048
      %68 = vsyncadd [#allocation9], %s67
      %s69 = sshll.u32 [#allocation10], 4
      %s70 = int_to_ptr.vmem [resolvable:$true] %s69
      %75 = dma.hbm_to_vmem [thread:$0]  %s5, 2048, %s70, [#allocation9], 64, 64, 4
    $region25: #{tpu_custom_call.1} parent=1 // pred_fallthru
      _
    // Predicated region
    $region26: #{tpu_custom_call.1} parent=1 // pred_check
      _
    $region27: #{tpu_custom_call.1} parent=1 // pred_check_branch
      %77 = sbr.rel (0) target = $region29
    $region28: #{tpu_custom_call.1} parent=1 // pred_region
      _
    $region29: #{tpu_custom_call.1} parent=1 // pred_fallthru
      _
    // Predicated region
    $region30: #{tpu_custom_call.1} parent=1 // pred_check
      _
    $region31: #{tpu_custom_call.1} parent=1 // pred_check_branch
      %79 = sbr.rel (0) target = $region33
    $region32: #{tpu_custom_call.1} parent=1 // pred_region
      %80 = dma.done [#allocation3], 128
    $region33: #{tpu_custom_call.1} parent=1 // pred_fallthru
      _
    // Predicated region
    $region34: #{tpu_custom_call.1} parent=1 // pred_check
      _
    $region35: #{tpu_custom_call.1} parent=1 // pred_check_branch
      %82 = sbr.rel (0) target = $region37
    $region36: #{tpu_custom_call.1} parent=1 // pred_region
      %83 = dma.done [#allocation6], 512
    $region37: #{tpu_custom_call.1} parent=1 // pred_fallthru
      _
    // Predicated region
    $region38: #{tpu_custom_call.1} parent=1 // pred_check
      _
    $region39: #{tpu_custom_call.1} parent=1 // pred_check_branch
      %85 = sbr.rel (0) target = $region41
    $region40: #{tpu_custom_call.1} parent=1 // pred_region
      %86 = dma.done [#allocation6], 16384
    $region41: #{tpu_custom_call.1} parent=1 // pred_fallthru
      _
    // Predicated region
    $region42: #{tpu_custom_call.1} parent=1 // pred_check
      _
    $region43: #{tpu_custom_call.1} parent=1 // pred_check_branch
      %88 = sbr.rel (0) target = $region45
    $region44: #{tpu_custom_call.1} parent=1 // pred_region
      %89 = dma.done [#allocation9], 128
    $region45: #{tpu_custom_call.1} parent=1 // pred_fallthru
      _
    // Predicated region
    $region46: #{tpu_custom_call.1} parent=1 // pred_check
      _
    $region47: #{tpu_custom_call.1} parent=1 // pred_check_branch
      %91 = sbr.rel (0) target = $region49
    $region48: #{tpu_custom_call.1} parent=1 // pred_region
      %92 = dma.done [#allocation9], 2048
    $region49: #{tpu_custom_call.1} parent=1 // pred_fallthru
      _
    %v94 = vld [vmem:[#allocation2] sm:$0xff]
    %v95 = vpack.c.bf16 %v94, %v94
    %v96 = vld [vmem:[#allocation5] sm:$0xff]
    %v97 = vld [vmem:[#allocation5 + $0x8] sm:$0xff]
    %v98 = vld [vmem:[#allocation5 + $0x10] sm:$0xff]
    %v99 = vld [vmem:[#allocation5 + $0x18] sm:$0x77]
    %v100 = vld [vmem:[%s2] sm:$0x3]
    %v102 = vlaneseq
    %v103 = vshrl.u32 %v102, 7
    %v104 = vsub.s32 0, %v103
    %v105 = vrot.slane %v100, %v104
    %v106 = vlaneseq
    %v107 = vshrl.u32 %v106, 7
    %v108 = vsub.s32 1, %v107
    %v109 = vrot.slane %v100, %v108
    %v116 = vunpack.c.l.b16 %v96
    %v117 = vunpack.c.h.b16 %v96
    %v118 = vunpack.c.l.b16 %v97
    %v119 = vunpack.c.h.b16 %v97
    %v120 = vunpack.c.l.b16 %v98
    %v121 = vunpack.c.h.b16 %v98
    %v122 = vunpack.c.l.b16 %v99
    %v123 = vunpack.c.h.b16 %v99
    %v124 = vpack.c.b16 %v118, %v116
    %v125 = vpack.c.b16 %v119, %v117
    %v126 = vpack.c.b16 %v122, %v120
    %v127 = vpack.c.b16 %v123, %v121
    %vm130 = vcmask 244736
    %v132 = vsel %vm130, %v95, 0
    %vm134 = vcmask 1046528
    %v136 = vsel %vm134, %v126, 0
    %v139 = vsel %vm134, %v127, 0
    %141 = vmatprep.subr.bf16.mxu0 0
    %142 = vmatpush1.bf16.msra.mxu0 0
    %143 = vmatprep.subr.bf16.mxu0 0
    %144 = vmatpush1.bf16.msra.mxu0 0
    %145 = vmatprep.subr.bf16.mxu0 0
    %146 = vmatpush1.bf16.msra.mxu0 0
    %147 = vmatprep.subr.bf16.mxu0 0
    %148 = vmatpush1.bf16.msra.mxu0 0
    %149 = vmatprep.subr.bf16.mxu0 0
    %150 = vmatpush1.bf16.msra.mxu0 0
    %151 = vmatprep.subr.bf16.mxu0 0
    %152 = vmatpush1.bf16.msra.mxu0 0
    %153 = vmatprep.subr.bf16.mxu0 %v139
    %154 = vmatpush1.bf16.msra.mxu0 %v136
    %155 = vmatprep.subr.bf16.mxu0 %v125
    %156 = vmatpush1.bf16.msra.mxu0 %v124
    %157 = vmatprep.subr.bf16.mxu0 0
    %158 = vmatpush2.bf16.msra.mxu0 0
    %159 = vmatprep.subr.bf16.mxu0 0
    %160 = vmatpush2.bf16.msra.mxu0 0
    %161 = vmatprep.subr.bf16.mxu0 0
    %162 = vmatpush2.bf16.msra.mxu0 0
    %163 = vmatprep.subr.bf16.mxu0 0
    %164 = vmatpush2.bf16.msra.mxu0 0
    %165 = vmatprep.subr.bf16.mxu0 0
    %166 = vmatpush2.bf16.msra.mxu0 0
    %167 = vmatprep.subr.bf16.mxu0 0
    %168 = vmatpush2.bf16.msra.mxu0 0
    %169 = vmatprep.subr.bf16.mxu0 0
    %170 = vmatpush2.bf16.msra.mxu0 0
    %171 = vmatprep.subr.bf16.mxu0 0
    %172 = vmatpush2.bf16.msra.mxu0 0
    %173 = vmatprep.mubr.bf16.mxu0 0
    %174 = vmatmul.mubr.bf16.gmra.mxu0 %v132
    %v175 = vpop.f32.mrf.mxu0
    %v176 = vadd.f32 %v105, %v175
    %v177 = vpop.f32.mrf.mxu0
    %v178 = vadd.f32 %v109, %v177
    %v179 = vpop.f32.mrf.mxu0
    %v180 = vpop.f32.mrf.mxu0
    %181 = vdwg.mxu0
    %v182 = vpack.c.bf16 %v176, %v176
    %v183 = vpack.c.bf16 %v178, %v178
    %v184 = vld [vmem:[#allocation7] sm:$0xff]
    %v185 = vld [vmem:[#allocation7 + $0x8] sm:$0xff]
    %v186 = vld [vmem:[#allocation7 + $0x10] sm:$0xff]
    %v187 = vld [vmem:[#allocation7 + $0x18] sm:$0xff]
    %v188 = vld [vmem:[#allocation7 + $0x20] sm:$0xff]
    %v189 = vld [vmem:[#allocation7 + $0x28] sm:$0xff]
    %v190 = vld [vmem:[#allocation7 + $0x30] sm:$0xff]
    %v191 = vld [vmem:[#allocation7 + $0x38] sm:$0xff]
    %v192 = vld [vmem:[#allocation7 + $0x40] sm:$0xff]
    %v193 = vld [vmem:[#allocation7 + $0x48] sm:$0xff]
    %v194 = vld [vmem:[#allocation7 + $0x50] sm:$0xff]
    %v195 = vld [vmem:[#allocation7 + $0x58] sm:$0xff]
    %v196 = vld [vmem:[#allocation7 + $0x60] sm:$0xff]
    %v197 = vld [vmem:[#allocation7 + $0x68] sm:$0xff]
    %v198 = vld [vmem:[#allocation7 + $0x70] sm:$0xff]
    %v199 = vld [vmem:[#allocation7 + $0x78] sm:$0xff]
    %v200 = vld [vmem:[#allocation7 + $0x80] sm:$0xff]
    %v201 = vld [vmem:[#allocation7 + $0x88] sm:$0xff]
    %v202 = vld [vmem:[#allocation7 + $0x90] sm:$0xff]
    %v203 = vld [vmem:[#allocation7 + $0x98] sm:$0xff]
    %v204 = vld [vmem:[#allocation7 + $0xa0] sm:$0xff]
    %v205 = vld [vmem:[#allocation7 + $0xa8] sm:$0xff]
    %v206 = vld [vmem:[#allocation7 + $0xb0] sm:$0xff]
    %v207 = vld [vmem:[#allocation7 + $0xb8] sm:$0xff]
    %v208 = vld [vmem:[#allocation7 + $0xc0] sm:$0xff]
    %v209 = vld [vmem:[#allocation7 + $0xc8] sm:$0xff]
    %v210 = vld [vmem:[#allocation7 + $0xd0] sm:$0xff]
    %v211 = vld [vmem:[#allocation7 + $0xd8] sm:$0xff]
    %v212 = vld [vmem:[#allocation7 + $0xe0] sm:$0xff]
    %v213 = vld [vmem:[#allocation7 + $0xe8] sm:$0xff]
    %v214 = vld [vmem:[#allocation7 + $0xf0] sm:$0xff]
    %v215 = vld [vmem:[#allocation7 + $0xf8] sm:$0xff]
    %v216 = vld [vmem:[#allocation8] sm:$0x3]
    %v218 = vlaneseq
    %v219 = vshrl.u32 %v218, 7
    %v220 = vsub.s32 0, %v219
    %v221 = vrot.slane %v216, %v220
    %v222 = vlaneseq
    %v223 = vshrl.u32 %v222, 7
    %v224 = vsub.s32 1, %v223
    %v225 = vrot.slane %v216, %v224
    %v260 = vunpack.c.l.b16 %v184
    %v261 = vunpack.c.h.b16 %v184
    %v262 = vunpack.c.l.b16 %v185
    %v263 = vunpack.c.h.b16 %v185
    %v264 = vunpack.c.l.b16 %v186
    %v265 = vunpack.c.h.b16 %v186
    %v266 = vunpack.c.l.b16 %v187
    %v267 = vunpack.c.h.b16 %v187
    %v268 = vunpack.c.l.b16 %v188
    %v269 = vunpack.c.h.b16 %v188
    %v270 = vunpack.c.l.b16 %v189
    %v271 = vunpack.c.h.b16 %v189
    %v272 = vunpack.c.l.b16 %v190
    %v273 = vunpack.c.h.b16 %v190
    %v274 = vunpack.c.l.b16 %v191
    %v275 = vunpack.c.h.b16 %v191
    %v276 = vunpack.c.l.b16 %v192
    %v277 = vunpack.c.h.b16 %v192
    %v278 = vunpack.c.l.b16 %v193
    %v279 = vunpack.c.h.b16 %v193
    %v280 = vunpack.c.l.b16 %v194
    %v281 = vunpack.c.h.b16 %v194
    %v282 = vunpack.c.l.b16 %v195
    %v283 = vunpack.c.h.b16 %v195
    %v284 = vunpack.c.l.b16 %v196
    %v285 = vunpack.c.h.b16 %v196
    %v286 = vunpack.c.l.b16 %v197
    %v287 = vunpack.c.h.b16 %v197
    %v288 = vunpack.c.l.b16 %v198
    %v289 = vunpack.c.h.b16 %v198
    %v290 = vunpack.c.l.b16 %v199
    %v291 = vunpack.c.h.b16 %v199
    %v292 = vunpack.c.l.b16 %v200
    %v293 = vunpack.c.h.b16 %v200
    %v294 = vunpack.c.l.b16 %v201
    %v295 = vunpack.c.h.b16 %v201
    %v296 = vunpack.c.l.b16 %v202
    %v297 = vunpack.c.h.b16 %v202
    %v298 = vunpack.c.l.b16 %v203
    %v299 = vunpack.c.h.b16 %v203
    %v300 = vunpack.c.l.b16 %v204
    %v301 = vunpack.c.h.b16 %v204
    %v302 = vunpack.c.l.b16 %v205
    %v303 = vunpack.c.h.b16 %v205
    %v304 = vunpack.c.l.b16 %v206
    %v305 = vunpack.c.h.b16 %v206
    %v306 = vunpack.c.l.b16 %v207
    %v307 = vunpack.c.h.b16 %v207
    %v308 = vunpack.c.l.b16 %v208
    %v309 = vunpack.c.h.b16 %v208
    %v310 = vunpack.c.l.b16 %v209
    %v311 = vunpack.c.h.b16 %v209
    %v312 = vunpack.c.l.b16 %v210
    %v313 = vunpack.c.h.b16 %v210
    %v314 = vunpack.c.l.b16 %v211
    %v315 = vunpack.c.h.b16 %v211
    %v316 = vunpack.c.l.b16 %v212
    %v317 = vunpack.c.h.b16 %v212
    %v318 = vunpack.c.l.b16 %v213
    %v319 = vunpack.c.h.b16 %v213
    %v320 = vunpack.c.l.b16 %v214
    %v321 = vunpack.c.h.b16 %v214
    %v322 = vunpack.c.l.b16 %v215
    %v323 = vunpack.c.h.b16 %v215
    %v324 = vpack.c.b16 %v262, %v260
    %v325 = vpack.c.b16 %v263, %v261
    %v326 = vpack.c.b16 %v266, %v264
    %v327 = vpack.c.b16 %v267, %v265
    %v328 = vpack.c.b16 %v270, %v268
    %v329 = vpack.c.b16 %v271, %v269
    %v330 = vpack.c.b16 %v274, %v272
    %v331 = vpack.c.b16 %v275, %v273
    %v332 = vpack.c.b16 %v278, %v276
    %v333 = vpack.c.b16 %v279, %v277
    %v334 = vpack.c.b16 %v282, %v280
    %v335 = vpack.c.b16 %v283, %v281
    %v336 = vpack.c.b16 %v286, %v284
    %v337 = vpack.c.b16 %v287, %v285
    %v338 = vpack.c.b16 %v290, %v288
    %v339 = vpack.c.b16 %v291, %v289
    %v340 = vpack.c.b16 %v294, %v292
    %v341 = vpack.c.b16 %v295, %v293
    %v342 = vpack.c.b16 %v298, %v296
    %v343 = vpack.c.b16 %v299, %v297
    %v344 = vpack.c.b16 %v302, %v300
    %v345 = vpack.c.b16 %v303, %v301
    %v346 = vpack.c.b16 %v306, %v304
    %v347 = vpack.c.b16 %v307, %v305
    %v348 = vpack.c.b16 %v310, %v308
    %v349 = vpack.c.b16 %v311, %v309
    %v350 = vpack.c.b16 %v314, %v312
    %v351 = vpack.c.b16 %v315, %v313
    %v352 = vpack.c.b16 %v318, %v316
    %v353 = vpack.c.b16 %v319, %v317
    %v354 = vpack.c.b16 %v322, %v320
    %v355 = vpack.c.b16 %v323, %v321
    %388 = vmatprep.subr.bf16.mxu0 %v339
    %389 = vmatpush1.bf16.msra.mxu0 %v338
    %390 = vmatprep.subr.bf16.mxu0 %v337
    %391 = vmatpush1.bf16.msra.mxu0 %v336
    %392 = vmatprep.subr.bf16.mxu0 %v335
    %393 = vmatpush1.bf16.msra.mxu0 %v334
    %394 = vmatprep.subr.bf16.mxu0 %v333
    %395 = vmatpush1.bf16.msra.mxu0 %v332
    %396 = vmatprep.subr.bf16.mxu0 %v331
    %397 = vmatpush1.bf16.msra.mxu0 %v330
    %398 = vmatprep.subr.bf16.mxu0 %v329
    %399 = vmatpush1.bf16.msra.mxu0 %v328
    %400 = vmatprep.subr.bf16.mxu0 %v327
    %401 = vmatpush1.bf16.msra.mxu0 %v326
    %402 = vmatprep.subr.bf16.mxu0 %v325
    %403 = vmatpush1.bf16.msra.mxu0 %v324
    %404 = vmatprep.subr.bf16.mxu0 %v355
    %405 = vmatpush2.bf16.msra.mxu0 %v354
    %406 = vmatprep.subr.bf16.mxu0 %v353
    %407 = vmatpush2.bf16.msra.mxu0 %v352
    %408 = vmatprep.subr.bf16.mxu0 %v351
    %409 = vmatpush2.bf16.msra.mxu0 %v350
    %410 = vmatprep.subr.bf16.mxu0 %v349
    %411 = vmatpush2.bf16.msra.mxu0 %v348
    %412 = vmatprep.subr.bf16.mxu0 %v347
    %413 = vmatpush2.bf16.msra.mxu0 %v346
    %414 = vmatprep.subr.bf16.mxu0 %v345
    %415 = vmatpush2.bf16.msra.mxu0 %v344
    %416 = vmatprep.subr.bf16.mxu0 %v343
    %417 = vmatpush2.bf16.msra.mxu0 %v342
    %418 = vmatprep.subr.bf16.mxu0 %v341
    %419 = vmatpush2.bf16.msra.mxu0 %v340
    %420 = vmatprep.mubr.bf16.mxu0 %v183
    %421 = vmatmul.mubr.bf16.gmra.mxu0 %v182
    %v422 = vpop.f32.mrf.mxu0
    %v423 = vadd.f32 %v221, %v422
    %v424 = vpop.f32.mrf.mxu0
    %v425 = vadd.f32 %v225, %v424
    %v426 = vpop.f32.mrf.mxu0
    %v427 = vpop.f32.mrf.mxu0
    %428 = vdwg.mxu0
    %v429 = vmax.f32 %v423, 0.0
    %v430 = vmax.f32 %v425, 0.0
    %v431 = vpack.c.bf16 %v429, %v429
    %v432 = vpack.c.bf16 %v430, %v430
    %s433 = scalar_lea.vmem [#allocation7], 256
    %v434 = vld [vmem:[%s433] sm:$0xff]
    %v435 = vld [vmem:[%s433 + $0x8] sm:$0xff]
    %v436 = vld [vmem:[%s433 + $0x10] sm:$0xff]
    %v437 = vld [vmem:[%s433 + $0x18] sm:$0xff]
    %v438 = vld [vmem:[%s433 + $0x20] sm:$0xff]
    %v439 = vld [vmem:[%s433 + $0x28] sm:$0xff]
    %v440 = vld [vmem:[%s433 + $0x30] sm:$0xff]
    %v441 = vld [vmem:[%s433 + $0x38] sm:$0xff]
    %v442 = vld [vmem:[%s433 + $0x40] sm:$0xff]
    %v443 = vld [vmem:[%s433 + $0x48] sm:$0xff]
    %v444 = vld [vmem:[%s433 + $0x50] sm:$0xff]
    %v445 = vld [vmem:[%s433 + $0x58] sm:$0xff]
    %v446 = vld [vmem:[%s433 + $0x60] sm:$0xff]
    %v447 = vld [vmem:[%s433 + $0x68] sm:$0xff]
    %v448 = vld [vmem:[%s433 + $0x70] sm:$0xff]
    %v449 = vld [vmem:[%s433 + $0x78] sm:$0xff]
    %v450 = vld [vmem:[%s433 + $0x80] sm:$0xff]
    %v451 = vld [vmem:[%s433 + $0x88] sm:$0xff]
    %v452 = vld [vmem:[%s433 + $0x90] sm:$0xff]
    %v453 = vld [vmem:[%s433 + $0x98] sm:$0xff]
    %v454 = vld [vmem:[%s433 + $0xa0] sm:$0xff]
    %v455 = vld [vmem:[%s433 + $0xa8] sm:$0xff]
    %v456 = vld [vmem:[%s433 + $0xb0] sm:$0xff]
    %v457 = vld [vmem:[%s433 + $0xb8] sm:$0xff]
    %v458 = vld [vmem:[%s433 + $0xc0] sm:$0xff]
    %v459 = vld [vmem:[%s433 + $0xc8] sm:$0xff]
    %v460 = vld [vmem:[%s433 + $0xd0] sm:$0xff]
    %v461 = vld [vmem:[%s433 + $0xd8] sm:$0xff]
    %v462 = vld [vmem:[%s433 + $0xe0] sm:$0xff]
    %v463 = vld [vmem:[%s433 + $0xe8] sm:$0xff]
    %v464 = vld [vmem:[%s433 + $0xf0] sm:$0xff]
    %v465 = vld [vmem:[%s433 + $0xf8] sm:$0xff]
    %s466 = scalar_lea.vmem [#allocation8], 2
    %v467 = vld [vmem:[%s466] sm:$0x3]
    %v469 = vlaneseq
    %v470 = vshrl.u32 %v469, 7
    %v471 = vsub.s32 0, %v470
    %v472 = vrot.slane %v467, %v471
    %v473 = vlaneseq
    %v474 = vshrl.u32 %v473, 7
    %v475 = vsub.s32 1, %v474
    %v476 = vrot.slane %v467, %v475
    %v511 = vunpack.c.l.b16 %v434
    %v512 = vunpack.c.h.b16 %v434
    %v513 = vunpack.c.l.b16 %v435
    %v514 = vunpack.c.h.b16 %v435
    %v515 = vunpack.c.l.b16 %v436
    %v516 = vunpack.c.h.b16 %v436
    %v517 = vunpack.c.l.b16 %v437
    %v518 = vunpack.c.h.b16 %v437
    %v519 = vunpack.c.l.b16 %v438
    %v520 = vunpack.c.h.b16 %v438
    %v521 = vunpack.c.l.b16 %v439
    %v522 = vunpack.c.h.b16 %v439
    %v523 = vunpack.c.l.b16 %v440
    %v524 = vunpack.c.h.b16 %v440
    %v525 = vunpack.c.l.b16 %v441
    %v526 = vunpack.c.h.b16 %v441
    %v527 = vunpack.c.l.b16 %v442
    %v528 = vunpack.c.h.b16 %v442
    %v529 = vunpack.c.l.b16 %v443
    %v530 = vunpack.c.h.b16 %v443
    %v531 = vunpack.c.l.b16 %v444
    %v532 = vunpack.c.h.b16 %v444
    %v533 = vunpack.c.l.b16 %v445
    %v534 = vunpack.c.h.b16 %v445
    %v535 = vunpack.c.l.b16 %v446
    %v536 = vunpack.c.h.b16 %v446
    %v537 = vunpack.c.l.b16 %v447
    %v538 = vunpack.c.h.b16 %v447
    %v539 = vunpack.c.l.b16 %v448
    %v540 = vunpack.c.h.b16 %v448
    %v541 = vunpack.c.l.b16 %v449
    %v542 = vunpack.c.h.b16 %v449
    %v543 = vunpack.c.l.b16 %v450
    %v544 = vunpack.c.h.b16 %v450
    %v545 = vunpack.c.l.b16 %v451
    %v546 = vunpack.c.h.b16 %v451
    %v547 = vunpack.c.l.b16 %v452
    %v548 = vunpack.c.h.b16 %v452
    %v549 = vunpack.c.l.b16 %v453
    %v550 = vunpack.c.h.b16 %v453
    %v551 = vunpack.c.l.b16 %v454
    %v552 = vunpack.c.h.b16 %v454
    %v553 = vunpack.c.l.b16 %v455
    %v554 = vunpack.c.h.b16 %v455
    %v555 = vunpack.c.l.b16 %v456
    %v556 = vunpack.c.h.b16 %v456
    %v557 = vunpack.c.l.b16 %v457
    %v558 = vunpack.c.h.b16 %v457
    %v559 = vunpack.c.l.b16 %v458
    %v560 = vunpack.c.h.b16 %v458
    %v561 = vunpack.c.l.b16 %v459
    %v562 = vunpack.c.h.b16 %v459
    %v563 = vunpack.c.l.b16 %v460
    %v564 = vunpack.c.h.b16 %v460
    %v565 = vunpack.c.l.b16 %v461
    %v566 = vunpack.c.h.b16 %v461
    %v567 = vunpack.c.l.b16 %v462
    %v568 = vunpack.c.h.b16 %v462
    %v569 = vunpack.c.l.b16 %v463
    %v570 = vunpack.c.h.b16 %v463
    %v571 = vunpack.c.l.b16 %v464
    %v572 = vunpack.c.h.b16 %v464
    %v573 = vunpack.c.l.b16 %v465
    %v574 = vunpack.c.h.b16 %v465
    %v575 = vpack.c.b16 %v513, %v511
    %v576 = vpack.c.b16 %v514, %v512
    %v577 = vpack.c.b16 %v517, %v515
    %v578 = vpack.c.b16 %v518, %v516
    %v579 = vpack.c.b16 %v521, %v519
    %v580 = vpack.c.b16 %v522, %v520
    %v581 = vpack.c.b16 %v525, %v523
    %v582 = vpack.c.b16 %v526, %v524
    %v583 = vpack.c.b16 %v529, %v527
    %v584 = vpack.c.b16 %v530, %v528
    %v585 = vpack.c.b16 %v533, %v531
    %v586 = vpack.c.b16 %v534, %v532
    %v587 = vpack.c.b16 %v537, %v535
    %v588 = vpack.c.b16 %v538, %v536
    %v589 = vpack.c.b16 %v541, %v539
    %v590 = vpack.c.b16 %v542, %v540
    %v591 = vpack.c.b16 %v545, %v543
    %v592 = vpack.c.b16 %v546, %v544
    %v593 = vpack.c.b16 %v549, %v547
    %v594 = vpack.c.b16 %v550, %v548
    %v595 = vpack.c.b16 %v553, %v551
    %v596 = vpack.c.b16 %v554, %v552
    %v597 = vpack.c.b16 %v557, %v555
    %v598 = vpack.c.b16 %v558, %v556
    %v599 = vpack.c.b16 %v561, %v559
    %v600 = vpack.c.b16 %v562, %v560
    %v601 = vpack.c.b16 %v565, %v563
    %v602 = vpack.c.b16 %v566, %v564
    %v603 = vpack.c.b16 %v569, %v567
    %v604 = vpack.c.b16 %v570, %v568
    %v605 = vpack.c.b16 %v573, %v571
    %v606 = vpack.c.b16 %v574, %v572
    %639 = vmatprep.subr.bf16.mxu0 %v590
    %640 = vmatpush1.bf16.msra.mxu0 %v589
    %641 = vmatprep.subr.bf16.mxu0 %v588
    %642 = vmatpush1.bf16.msra.mxu0 %v587
    %643 = vmatprep.subr.bf16.mxu0 %v586
    %644 = vmatpush1.bf16.msra.mxu0 %v585
    %645 = vmatprep.subr.bf16.mxu0 %v584
    %646 = vmatpush1.bf16.msra.mxu0 %v583
    %647 = vmatprep.subr.bf16.mxu0 %v582
    %648 = vmatpush1.bf16.msra.mxu0 %v581
    %649 = vmatprep.subr.bf16.mxu0 %v580
    %650 = vmatpush1.bf16.msra.mxu0 %v579
    %651 = vmatprep.subr.bf16.mxu0 %v578
    %652 = vmatpush1.bf16.msra.mxu0 %v577
    %653 = vmatprep.subr.bf16.mxu0 %v576
    %654 = vmatpush1.bf16.msra.mxu0 %v575
    %655 = vmatprep.subr.bf16.mxu0 %v606
    %656 = vmatpush2.bf16.msra.mxu0 %v605
    %657 = vmatprep.subr.bf16.mxu0 %v604
    %658 = vmatpush2.bf16.msra.mxu0 %v603
    %659 = vmatprep.subr.bf16.mxu0 %v602
    %660 = vmatpush2.bf16.msra.mxu0 %v601
    %661 = vmatprep.subr.bf16.mxu0 %v600
    %662 = vmatpush2.bf16.msra.mxu0 %v599
    %663 = vmatprep.subr.bf16.mxu0 %v598
    %664 = vmatpush2.bf16.msra.mxu0 %v597
    %665 = vmatprep.subr.bf16.mxu0 %v596
    %666 = vmatpush2.bf16.msra.mxu0 %v595
    %667 = vmatprep.subr.bf16.mxu0 %v594
    %668 = vmatpush2.bf16.msra.mxu0 %v593
    %669 = vmatprep.subr.bf16.mxu0 %v592
    %670 = vmatpush2.bf16.msra.mxu0 %v591
    %671 = vmatprep.mubr.bf16.mxu0 %v432
    %672 = vmatmul.mubr.bf16.gmra.mxu0 %v431
    %v673 = vpop.f32.mrf.mxu0
    %v674 = vadd.f32 %v472, %v673
    %v675 = vpop.f32.mrf.mxu0
    %v676 = vadd.f32 %v476, %v675
    %v677 = vpop.f32.mrf.mxu0
    %v678 = vpop.f32.mrf.mxu0
    %679 = vdwg.mxu0
    %v680 = vmax.f32 %v674, 0.0
    %v681 = vmax.f32 %v676, 0.0
    %v682 = vadd.f32 %v176, %v680
    %v683 = vadd.f32 %v178, %v681
    %v684 = vpack.c.bf16 %v682, %v682
    %v685 = vpack.c.bf16 %v683, %v683
    %s686 = scalar_lea.vmem [#allocation7], 512
    %v687 = vld [vmem:[%s686] sm:$0xff]
    %v688 = vld [vmem:[%s686 + $0x8] sm:$0xff]
    %v689 = vld [vmem:[%s686 + $0x10] sm:$0xff]
    %v690 = vld [vmem:[%s686 + $0x18] sm:$0xff]
    %v691 = vld [vmem:[%s686 + $0x20] sm:$0xff]
    %v692 = vld [vmem:[%s686 + $0x28] sm:$0xff]
    %v693 = vld [vmem:[%s686 + $0x30] sm:$0xff]
    %v694 = vld [vmem:[%s686 + $0x38] sm:$0xff]
    %v695 = vld [vmem:[%s686 + $0x40] sm:$0xff]
    %v696 = vld [vmem:[%s686 + $0x48] sm:$0xff]
    %v697 = vld [vmem:[%s686 + $0x50] sm:$0xff]
    %v698 = vld [vmem:[%s686 + $0x58] sm:$0xff]
    %v699 = vld [vmem:[%s686 + $0x60] sm:$0xff]
    %v700 = vld [vmem:[%s686 + $0x68] sm:$0xff]
    %v701 = vld [vmem:[%s686 + $0x70] sm:$0xff]
    %v702 = vld [vmem:[%s686 + $0x78] sm:$0xff]
    %v703 = vld [vmem:[%s686 + $0x80] sm:$0xff]
    %v704 = vld [vmem:[%s686 + $0x88] sm:$0xff]
    %v705 = vld [vmem:[%s686 + $0x90] sm:$0xff]
    %v706 = vld [vmem:[%s686 + $0x98] sm:$0xff]
    %v707 = vld [vmem:[%s686 + $0xa0] sm:$0xff]
    %v708 = vld [vmem:[%s686 + $0xa8] sm:$0xff]
    %v709 = vld [vmem:[%s686 + $0xb0] sm:$0xff]
    %v710 = vld [vmem:[%s686 + $0xb8] sm:$0xff]
    %v711 = vld [vmem:[%s686 + $0xc0] sm:$0xff]
    %v712 = vld [vmem:[%s686 + $0xc8] sm:$0xff]
    %v713 = vld [vmem:[%s686 + $0xd0] sm:$0xff]
    %v714 = vld [vmem:[%s686 + $0xd8] sm:$0xff]
    %v715 = vld [vmem:[%s686 + $0xe0] sm:$0xff]
    %v716 = vld [vmem:[%s686 + $0xe8] sm:$0xff]
    %v717 = vld [vmem:[%s686 + $0xf0] sm:$0xff]
    %v718 = vld [vmem:[%s686 + $0xf8] sm:$0xff]
    %s719 = scalar_lea.vmem [#allocation8], 4
    %v720 = vld [vmem:[%s719] sm:$0x3]
    %v722 = vlaneseq
    %v723 = vshrl.u32 %v722, 7
    %v724 = vsub.s32 0, %v723
    %v725 = vrot.slane %v720, %v724
    %v726 = vlaneseq
    %v727 = vshrl.u32 %v726, 7
    %v728 = vsub.s32 1, %v727
    %v729 = vrot.slane %v720, %v728
    %v764 = vunpack.c.l.b16 %v687
    %v765 = vunpack.c.h.b16 %v687
    %v766 = vunpack.c.l.b16 %v688
    %v767 = vunpack.c.h.b16 %v688
    %v768 = vunpack.c.l.b16 %v689
    %v769 = vunpack.c.h.b16 %v689
    %v770 = vunpack.c.l.b16 %v690
    %v771 = vunpack.c.h.b16 %v690
    %v772 = vunpack.c.l.b16 %v691
    %v773 = vunpack.c.h.b16 %v691
    %v774 = vunpack.c.l.b16 %v692
    %v775 = vunpack.c.h.b16 %v692
    %v776 = vunpack.c.l.b16 %v693
    %v777 = vunpack.c.h.b16 %v693
    %v778 = vunpack.c.l.b16 %v694
    %v779 = vunpack.c.h.b16 %v694
    %v780 = vunpack.c.l.b16 %v695
    %v781 = vunpack.c.h.b16 %v695
    %v782 = vunpack.c.l.b16 %v696
    %v783 = vunpack.c.h.b16 %v696
    %v784 = vunpack.c.l.b16 %v697
    %v785 = vunpack.c.h.b16 %v697
    %v786 = vunpack.c.l.b16 %v698
    %v787 = vunpack.c.h.b16 %v698
    %v788 = vunpack.c.l.b16 %v699
    %v789 = vunpack.c.h.b16 %v699
    %v790 = vunpack.c.l.b16 %v700
    %v791 = vunpack.c.h.b16 %v700
    %v792 = vunpack.c.l.b16 %v701
    %v793 = vunpack.c.h.b16 %v701
    %v794 = vunpack.c.l.b16 %v702
    %v795 = vunpack.c.h.b16 %v702
    %v796 = vunpack.c.l.b16 %v703
    %v797 = vunpack.c.h.b16 %v703
    %v798 = vunpack.c.l.b16 %v704
    %v799 = vunpack.c.h.b16 %v704
    %v800 = vunpack.c.l.b16 %v705
    %v801 = vunpack.c.h.b16 %v705
    %v802 = vunpack.c.l.b16 %v706
    %v803 = vunpack.c.h.b16 %v706
    %v804 = vunpack.c.l.b16 %v707
    %v805 = vunpack.c.h.b16 %v707
    %v806 = vunpack.c.l.b16 %v708
    %v807 = vunpack.c.h.b16 %v708
    %v808 = vunpack.c.l.b16 %v709
    %v809 = vunpack.c.h.b16 %v709
    %v810 = vunpack.c.l.b16 %v710
    %v811 = vunpack.c.h.b16 %v710
    %v812 = vunpack.c.l.b16 %v711
    %v813 = vunpack.c.h.b16 %v711
    %v814 = vunpack.c.l.b16 %v712
    %v815 = vunpack.c.h.b16 %v712
    %v816 = vunpack.c.l.b16 %v713
    %v817 = vunpack.c.h.b16 %v713
    %v818 = vunpack.c.l.b16 %v714
    %v819 = vunpack.c.h.b16 %v714
    %v820 = vunpack.c.l.b16 %v715
    %v821 = vunpack.c.h.b16 %v715
    %v822 = vunpack.c.l.b16 %v716
    %v823 = vunpack.c.h.b16 %v716
    %v824 = vunpack.c.l.b16 %v717
    %v825 = vunpack.c.h.b16 %v717
    %v826 = vunpack.c.l.b16 %v718
    %v827 = vunpack.c.h.b16 %v718
    %v828 = vpack.c.b16 %v766, %v764
    %v829 = vpack.c.b16 %v767, %v765
    %v830 = vpack.c.b16 %v770, %v768
    %v831 = vpack.c.b16 %v771, %v769
    %v832 = vpack.c.b16 %v774, %v772
    %v833 = vpack.c.b16 %v775, %v773
    %v834 = vpack.c.b16 %v778, %v776
    %v835 = vpack.c.b16 %v779, %v777
    %v836 = vpack.c.b16 %v782, %v780
    %v837 = vpack.c.b16 %v783, %v781
    %v838 = vpack.c.b16 %v786, %v784
    %v839 = vpack.c.b16 %v787, %v785
    %v840 = vpack.c.b16 %v790, %v788
    %v841 = vpack.c.b16 %v791, %v789
    %v842 = vpack.c.b16 %v794, %v792
    %v843 = vpack.c.b16 %v795, %v793
    %v844 = vpack.c.b16 %v798, %v796
    %v845 = vpack.c.b16 %v799, %v797
    %v846 = vpack.c.b16 %v802, %v800
    %v847 = vpack.c.b16 %v803, %v801
    %v848 = vpack.c.b16 %v806, %v804
    %v849 = vpack.c.b16 %v807, %v805
    %v850 = vpack.c.b16 %v810, %v808
    %v851 = vpack.c.b16 %v811, %v809
    %v852 = vpack.c.b16 %v814, %v812
    %v853 = vpack.c.b16 %v815, %v813
    %v854 = vpack.c.b16 %v818, %v816
    %v855 = vpack.c.b16 %v819, %v817
    %v856 = vpack.c.b16 %v822, %v820
    %v857 = vpack.c.b16 %v823, %v821
    %v858 = vpack.c.b16 %v826, %v824
    %v859 = vpack.c.b16 %v827, %v825
    %892 = vmatprep.subr.bf16.mxu0 %v843
    %893 = vmatpush1.bf16.msra.mxu0 %v842
    %894 = vmatprep.subr.bf16.mxu0 %v841
    %895 = vmatpush1.bf16.msra.mxu0 %v840
    %896 = vmatprep.subr.bf16.mxu0 %v839
    %897 = vmatpush1.bf16.msra.mxu0 %v838
    %898 = vmatprep.subr.bf16.mxu0 %v837
    %899 = vmatpush1.bf16.msra.mxu0 %v836
    %900 = vmatprep.subr.bf16.mxu0 %v835
    %901 = vmatpush1.bf16.msra.mxu0 %v834
    %902 = vmatprep.subr.bf16.mxu0 %v833
    %903 = vmatpush1.bf16.msra.mxu0 %v832
    %904 = vmatprep.subr.bf16.mxu0 %v831
    %905 = vmatpush1.bf16.msra.mxu0 %v830
    %906 = vmatprep.subr.bf16.mxu0 %v829
    %907 = vmatpush1.bf16.msra.mxu0 %v828
    %908 = vmatprep.subr.bf16.mxu0 %v859
    %909 = vmatpush2.bf16.msra.mxu0 %v858
    %910 = vmatprep.subr.bf16.mxu0 %v857
    %911 = vmatpush2.bf16.msra.mxu0 %v856
    %912 = vmatprep.subr.bf16.mxu0 %v855
    %913 = vmatpush2.bf16.msra.mxu0 %v854
    %914 = vmatprep.subr.bf16.mxu0 %v853
    %915 = vmatpush2.bf16.msra.mxu0 %v852
    %916 = vmatprep.subr.bf16.mxu0 %v851
    %917 = vmatpush2.bf16.msra.mxu0 %v850
    %918 = vmatprep.subr.bf16.mxu0 %v849
    %919 = vmatpush2.bf16.msra.mxu0 %v848
    %920 = vmatprep.subr.bf16.mxu0 %v847
    %921 = vmatpush2.bf16.msra.mxu0 %v846
    %922 = vmatprep.subr.bf16.mxu0 %v845
    %923 = vmatpush2.bf16.msra.mxu0 %v844
    %924 = vmatprep.mubr.bf16.mxu0 %v685
    %925 = vmatmul.mubr.bf16.gmra.mxu0 %v684
    %v926 = vpop.f32.mrf.mxu0
    %v927 = vadd.f32 %v725, %v926
    %v928 = vpop.f32.mrf.mxu0
    %v929 = vadd.f32 %v729, %v928
    %v930 = vpop.f32.mrf.mxu0
    %v931 = vpop.f32.mrf.mxu0
    %932 = vdwg.mxu0
    %v933 = vmax.f32 %v927, 0.0
    %v934 = vmax.f32 %v929, 0.0
    %v935 = vpack.c.bf16 %v933, %v933
    %v936 = vpack.c.bf16 %v934, %v934
    %s937 = scalar_lea.vmem [#allocation7], 768
    %v938 = vld [vmem:[%s937] sm:$0xff]
    %v939 = vld [vmem:[%s937 + $0x8] sm:$0xff]
    %v940 = vld [vmem:[%s937 + $0x10] sm:$0xff]
    %v941 = vld [vmem:[%s937 + $0x18] sm:$0xff]
    %v942 = vld [vmem:[%s937 + $0x20] sm:$0xff]
    %v943 = vld [vmem:[%s937 + $0x28] sm:$0xff]
    %v944 = vld [vmem:[%s937 + $0x30] sm:$0xff]
    %v945 = vld [vmem:[%s937 + $0x38] sm:$0xff]
    %v946 = vld [vmem:[%s937 + $0x40] sm:$0xff]
    %v947 = vld [vmem:[%s937 + $0x48] sm:$0xff]
    %v948 = vld [vmem:[%s937 + $0x50] sm:$0xff]
    %v949 = vld [vmem:[%s937 + $0x58] sm:$0xff]
    %v950 = vld [vmem:[%s937 + $0x60] sm:$0xff]
    %v951 = vld [vmem:[%s937 + $0x68] sm:$0xff]
    %v952 = vld [vmem:[%s937 + $0x70] sm:$0xff]
    %v953 = vld [vmem:[%s937 + $0x78] sm:$0xff]
    %v954 = vld [vmem:[%s937 + $0x80] sm:$0xff]
    %v955 = vld [vmem:[%s937 + $0x88] sm:$0xff]
    %v956 = vld [vmem:[%s937 + $0x90] sm:$0xff]
    %v957 = vld [vmem:[%s937 + $0x98] sm:$0xff]
    %v958 = vld [vmem:[%s937 + $0xa0] sm:$0xff]
    %v959 = vld [vmem:[%s937 + $0xa8] sm:$0xff]
    %v960 = vld [vmem:[%s937 + $0xb0] sm:$0xff]
    %v961 = vld [vmem:[%s937 + $0xb8] sm:$0xff]
    %v962 = vld [vmem:[%s937 + $0xc0] sm:$0xff]
    %v963 = vld [vmem:[%s937 + $0xc8] sm:$0xff]
    %v964 = vld [vmem:[%s937 + $0xd0] sm:$0xff]
    %v965 = vld [vmem:[%s937 + $0xd8] sm:$0xff]
    %v966 = vld [vmem:[%s937 + $0xe0] sm:$0xff]
    %v967 = vld [vmem:[%s937 + $0xe8] sm:$0xff]
    %v968 = vld [vmem:[%s937 + $0xf0] sm:$0xff]
    %v969 = vld [vmem:[%s937 + $0xf8] sm:$0xff]
    %s970 = scalar_lea.vmem [#allocation8], 6
    %v971 = vld [vmem:[%s970] sm:$0x3]
    %v973 = vlaneseq
    %v974 = vshrl.u32 %v973, 7
    %v975 = vsub.s32 0, %v974
    %v976 = vrot.slane %v971, %v975
    %v977 = vlaneseq
    %v978 = vshrl.u32 %v977, 7
    %v979 = vsub.s32 1, %v978
    %v980 = vrot.slane %v971, %v979
    %v1015 = vunpack.c.l.b16 %v938
    %v1016 = vunpack.c.h.b16 %v938
    %v1017 = vunpack.c.l.b16 %v939
    %v1018 = vunpack.c.h.b16 %v939
    %v1019 = vunpack.c.l.b16 %v940
    %v1020 = vunpack.c.h.b16 %v940
    %v1021 = vunpack.c.l.b16 %v941
    %v1022 = vunpack.c.h.b16 %v941
    %v1023 = vunpack.c.l.b16 %v942
    %v1024 = vunpack.c.h.b16 %v942
    %v1025 = vunpack.c.l.b16 %v943
    %v1026 = vunpack.c.h.b16 %v943
    %v1027 = vunpack.c.l.b16 %v944
    %v1028 = vunpack.c.h.b16 %v944
    %v1029 = vunpack.c.l.b16 %v945
    %v1030 = vunpack.c.h.b16 %v945
    %v1031 = vunpack.c.l.b16 %v946
    %v1032 = vunpack.c.h.b16 %v946
    %v1033 = vunpack.c.l.b16 %v947
    %v1034 = vunpack.c.h.b16 %v947
    %v1035 = vunpack.c.l.b16 %v948
    %v1036 = vunpack.c.h.b16 %v948
    %v1037 = vunpack.c.l.b16 %v949
    %v1038 = vunpack.c.h.b16 %v949
    %v1039 = vunpack.c.l.b16 %v950
    %v1040 = vunpack.c.h.b16 %v950
    %v1041 = vunpack.c.l.b16 %v951
    %v1042 = vunpack.c.h.b16 %v951
    %v1043 = vunpack.c.l.b16 %v952
    %v1044 = vunpack.c.h.b16 %v952
    %v1045 = vunpack.c.l.b16 %v953
    %v1046 = vunpack.c.h.b16 %v953
    %v1047 = vunpack.c.l.b16 %v954
    %v1048 = vunpack.c.h.b16 %v954
    %v1049 = vunpack.c.l.b16 %v955
    %v1050 = vunpack.c.h.b16 %v955
    %v1051 = vunpack.c.l.b16 %v956
    %v1052 = vunpack.c.h.b16 %v956
    %v1053 = vunpack.c.l.b16 %v957
    %v1054 = vunpack.c.h.b16 %v957
    %v1055 = vunpack.c.l.b16 %v958
    %v1056 = vunpack.c.h.b16 %v958
    %v1057 = vunpack.c.l.b16 %v959
    %v1058 = vunpack.c.h.b16 %v959
    %v1059 = vunpack.c.l.b16 %v960
    %v1060 = vunpack.c.h.b16 %v960
    %v1061 = vunpack.c.l.b16 %v961
    %v1062 = vunpack.c.h.b16 %v961
    %v1063 = vunpack.c.l.b16 %v962
    %v1064 = vunpack.c.h.b16 %v962
    %v1065 = vunpack.c.l.b16 %v963
    %v1066 = vunpack.c.h.b16 %v963
    %v1067 = vunpack.c.l.b16 %v964
    %v1068 = vunpack.c.h.b16 %v964
    %v1069 = vunpack.c.l.b16 %v965
    %v1070 = vunpack.c.h.b16 %v965
    %v1071 = vunpack.c.l.b16 %v966
    %v1072 = vunpack.c.h.b16 %v966
    %v1073 = vunpack.c.l.b16 %v967
    %v1074 = vunpack.c.h.b16 %v967
    %v1075 = vunpack.c.l.b16 %v968
    %v1076 = vunpack.c.h.b16 %v968
    %v1077 = vunpack.c.l.b16 %v969
    %v1078 = vunpack.c.h.b16 %v969
    %v1079 = vpack.c.b16 %v1017, %v1015
    %v1080 = vpack.c.b16 %v1018, %v1016
    %v1081 = vpack.c.b16 %v1021, %v1019
    %v1082 = vpack.c.b16 %v1022, %v1020
    %v1083 = vpack.c.b16 %v1025, %v1023
    %v1084 = vpack.c.b16 %v1026, %v1024
    %v1085 = vpack.c.b16 %v1029, %v1027
    %v1086 = vpack.c.b16 %v1030, %v1028
    %v1087 = vpack.c.b16 %v1033, %v1031
    %v1088 = vpack.c.b16 %v1034, %v1032
    %v1089 = vpack.c.b16 %v1037, %v1035
    %v1090 = vpack.c.b16 %v1038, %v1036
    %v1091 = vpack.c.b16 %v1041, %v1039
    %v1092 = vpack.c.b16 %v1042, %v1040
    %v1093 = vpack.c.b16 %v1045, %v1043
    %v1094 = vpack.c.b16 %v1046, %v1044
    %v1095 = vpack.c.b16 %v1049, %v1047
    %v1096 = vpack.c.b16 %v1050, %v1048
    %v1097 = vpack.c.b16 %v1053, %v1051
    %v1098 = vpack.c.b16 %v1054, %v1052
    %v1099 = vpack.c.b16 %v1057, %v1055
    %v1100 = vpack.c.b16 %v1058, %v1056
    %v1101 = vpack.c.b16 %v1061, %v1059
    %v1102 = vpack.c.b16 %v1062, %v1060
    %v1103 = vpack.c.b16 %v1065, %v1063
    %v1104 = vpack.c.b16 %v1066, %v1064
    %v1105 = vpack.c.b16 %v1069, %v1067
    %v1106 = vpack.c.b16 %v1070, %v1068
    %v1107 = vpack.c.b16 %v1073, %v1071
    %v1108 = vpack.c.b16 %v1074, %v1072
    %v1109 = vpack.c.b16 %v1077, %v1075
    %v1110 = vpack.c.b16 %v1078, %v1076
    %1143 = vmatprep.subr.bf16.mxu0 %v1094
    %1144 = vmatpush1.bf16.msra.mxu0 %v1093
    %1145 = vmatprep.subr.bf16.mxu0 %v1092
    %1146 = vmatpush1.bf16.msra.mxu0 %v1091
    %1147 = vmatprep.subr.bf16.mxu0 %v1090
    %1148 = vmatpush1.bf16.msra.mxu0 %v1089
    %1149 = vmatprep.subr.bf16.mxu0 %v1088
    %1150 = vmatpush1.bf16.msra.mxu0 %v1087
    %1151 = vmatprep.subr.bf16.mxu0 %v1086
    %1152 = vmatpush1.bf16.msra.mxu0 %v1085
    %1153 = vmatprep.subr.bf16.mxu0 %v1084
    %1154 = vmatpush1.bf16.msra.mxu0 %v1083
    %1155 = vmatprep.subr.bf16.mxu0 %v1082
    %1156 = vmatpush1.bf16.msra.mxu0 %v1081
    %1157 = vmatprep.subr.bf16.mxu0 %v1080
    %1158 = vmatpush1.bf16.msra.mxu0 %v1079
    %1159 = vmatprep.subr.bf16.mxu0 %v1110
    %1160 = vmatpush2.bf16.msra.mxu0 %v1109
    %1161 = vmatprep.subr.bf16.mxu0 %v1108
    %1162 = vmatpush2.bf16.msra.mxu0 %v1107
    %1163 = vmatprep.subr.bf16.mxu0 %v1106
    %1164 = vmatpush2.bf16.msra.mxu0 %v1105
    %1165 = vmatprep.subr.bf16.mxu0 %v1104
    %1166 = vmatpush2.bf16.msra.mxu0 %v1103
    %1167 = vmatprep.subr.bf16.mxu0 %v1102
    %1168 = vmatpush2.bf16.msra.mxu0 %v1101
    %1169 = vmatprep.subr.bf16.mxu0 %v1100
    %1170 = vmatpush2.bf16.msra.mxu0 %v1099
    %1171 = vmatprep.subr.bf16.mxu0 %v1098
    %1172 = vmatpush2.bf16.msra.mxu0 %v1097
    %1173 = vmatprep.subr.bf16.mxu0 %v1096
    %1174 = vmatpush2.bf16.msra.mxu0 %v1095
    %1175 = vmatprep.mubr.bf16.mxu0 %v936
    %1176 = vmatmul.mubr.bf16.gmra.mxu0 %v935
    %v1177 = vpop.f32.mrf.mxu0
    %v1178 = vadd.f32 %v976, %v1177
    %v1179 = vpop.f32.mrf.mxu0
    %v1180 = vadd.f32 %v980, %v1179
    %v1181 = vpop.f32.mrf.mxu0
    %v1182 = vpop.f32.mrf.mxu0
    %1183 = vdwg.mxu0
    %v1184 = vmax.f32 %v1178, 0.0
    %v1185 = vmax.f32 %v1180, 0.0
    %v1186 = vadd.f32 %v682, %v1184
    %v1187 = vadd.f32 %v683, %v1185
    %v1188 = vpack.c.bf16 %v1186, %v1186
    %v1189 = vpack.c.bf16 %v1187, %v1187
    %v1190 = vld [vmem:[#allocation10] sm:$0xf]
    %v1191 = vld [vmem:[#allocation10 + $0x4] sm:$0xf]
    %v1192 = vld [vmem:[#allocation10 + $0x8] sm:$0xf]
    %v1193 = vld [vmem:[#allocation10 + $0xc] sm:$0xf]
    %v1194 = vld [vmem:[#allocation10 + $0x10] sm:$0xf]
    %v1195 = vld [vmem:[#allocation10 + $0x14] sm:$0xf]
    %v1196 = vld [vmem:[#allocation10 + $0x18] sm:$0xf]
    %v1197 = vld [vmem:[#allocation10 + $0x1c] sm:$0xf]
    %v1198 = vld [vmem:[#allocation10 + $0x20] sm:$0xf]
    %v1199 = vld [vmem:[#allocation10 + $0x24] sm:$0xf]
    %v1200 = vld [vmem:[#allocation10 + $0x28] sm:$0xf]
    %v1201 = vld [vmem:[#allocation10 + $0x2c] sm:$0xf]
    %v1202 = vld [vmem:[#allocation10 + $0x30] sm:$0xf]
    %v1203 = vld [vmem:[#allocation10 + $0x34] sm:$0xf]
    %v1204 = vld [vmem:[#allocation10 + $0x38] sm:$0xf]
    %v1205 = vld [vmem:[#allocation10 + $0x3c] sm:$0xf]
    %v1206 = vld [vmem:[#allocation10 + $0x40] sm:$0xf]
    %v1207 = vld [vmem:[#allocation10 + $0x44] sm:$0xf]
    %v1208 = vld [vmem:[#allocation10 + $0x48] sm:$0xf]
    %v1209 = vld [vmem:[#allocation10 + $0x4c] sm:$0xf]
    %v1210 = vld [vmem:[#allocation10 + $0x50] sm:$0xf]
    %v1211 = vld [vmem:[#allocation10 + $0x54] sm:$0xf]
    %v1212 = vld [vmem:[#allocation10 + $0x58] sm:$0xf]
    %v1213 = vld [vmem:[#allocation10 + $0x5c] sm:$0xf]
    %v1214 = vld [vmem:[#allocation10 + $0x60] sm:$0xf]
    %v1215 = vld [vmem:[#allocation10 + $0x64] sm:$0xf]
    %v1216 = vld [vmem:[#allocation10 + $0x68] sm:$0xf]
    %v1217 = vld [vmem:[#allocation10 + $0x6c] sm:$0xf]
    %v1218 = vld [vmem:[#allocation10 + $0x70] sm:$0xf]
    %v1219 = vld [vmem:[#allocation10 + $0x74] sm:$0xf]
    %v1220 = vld [vmem:[#allocation10 + $0x78] sm:$0xf]
    %v1221 = vld [vmem:[#allocation10 + $0x7c] sm:$0xf]
    %v1222 = vld [vmem:[%s6] sm:$0x1]
    %v1224 = vlaneseq
    %v1225 = vshrl.u32 %v1224, 7
    %v1226 = vsub.s32 0, %v1225
    %v1227 = vrot.slane %v1222, %v1226
    %v1261 = vunpack.c.l.b16 %v1190
    %v1262 = vunpack.c.l.b16 %v1191
    %v1263 = vunpack.c.l.b16 %v1192
    %v1264 = vunpack.c.l.b16 %v1193
    %v1265 = vunpack.c.l.b16 %v1194
    %v1266 = vunpack.c.l.b16 %v1195
    %v1267 = vunpack.c.l.b16 %v1196
    %v1268 = vunpack.c.l.b16 %v1197
    %v1269 = vunpack.c.l.b16 %v1198
    %v1270 = vunpack.c.l.b16 %v1199
    %v1271 = vunpack.c.l.b16 %v1200
    %v1272 = vunpack.c.l.b16 %v1201
    %v1273 = vunpack.c.l.b16 %v1202
    %v1274 = vunpack.c.l.b16 %v1203
    %v1275 = vunpack.c.l.b16 %v1204
    %v1276 = vunpack.c.l.b16 %v1205
    %v1277 = vunpack.c.l.b16 %v1206
    %v1278 = vunpack.c.l.b16 %v1207
    %v1279 = vunpack.c.l.b16 %v1208
    %v1280 = vunpack.c.l.b16 %v1209
    %v1281 = vunpack.c.l.b16 %v1210
    %v1282 = vunpack.c.l.b16 %v1211
    %v1283 = vunpack.c.l.b16 %v1212
    %v1284 = vunpack.c.l.b16 %v1213
    %v1285 = vunpack.c.l.b16 %v1214
    %v1286 = vunpack.c.l.b16 %v1215
    %v1287 = vunpack.c.l.b16 %v1216
    %v1288 = vunpack.c.l.b16 %v1217
    %v1289 = vunpack.c.l.b16 %v1218
    %v1290 = vunpack.c.l.b16 %v1219
    %v1291 = vunpack.c.l.b16 %v1220
    %v1292 = vunpack.c.l.b16 %v1221
    %v1293 = vpack.c.b16 %v1262, %v1261
    %v1294 = vpack.c.b16 %v1264, %v1263
    %v1295 = vpack.c.b16 %v1266, %v1265
    %v1296 = vpack.c.b16 %v1268, %v1267
    %v1297 = vpack.c.b16 %v1270, %v1269
    %v1298 = vpack.c.b16 %v1272, %v1271
    %v1299 = vpack.c.b16 %v1274, %v1273
    %v1300 = vpack.c.b16 %v1276, %v1275
    %v1301 = vpack.c.b16 %v1278, %v1277
    %v1302 = vpack.c.b16 %v1280, %v1279
    %v1303 = vpack.c.b16 %v1282, %v1281
    %v1304 = vpack.c.b16 %v1284, %v1283
    %v1305 = vpack.c.b16 %v1286, %v1285
    %v1306 = vpack.c.b16 %v1288, %v1287
    %v1307 = vpack.c.b16 %v1290, %v1289
    %v1308 = vpack.c.b16 %v1292, %v1291
    %1325 = vmatprep.subr.bf16.mxu0 0
    %1326 = vmatpush1.bf16.msra.mxu0 %v1300
    %1327 = vmatprep.subr.bf16.mxu0 0
    %1328 = vmatpush1.bf16.msra.mxu0 %v1299
    %1329 = vmatprep.subr.bf16.mxu0 0
    %1330 = vmatpush1.bf16.msra.mxu0 %v1298
    %1331 = vmatprep.subr.bf16.mxu0 0
    %1332 = vmatpush1.bf16.msra.mxu0 %v1297
    %1333 = vmatprep.subr.bf16.mxu0 0
    %1334 = vmatpush1.bf16.msra.mxu0 %v1296
    %1335 = vmatprep.subr.bf16.mxu0 0
    %1336 = vmatpush1.bf16.msra.mxu0 %v1295
    %1337 = vmatprep.subr.bf16.mxu0 0
    %1338 = vmatpush1.bf16.msra.mxu0 %v1294
    %1339 = vmatprep.subr.bf16.mxu0 0
    %1340 = vmatpush1.bf16.msra.mxu0 %v1293
    %1341 = vmatprep.subr.bf16.mxu0 0
    %1342 = vmatpush2.bf16.msra.mxu0 %v1308
    %1343 = vmatprep.subr.bf16.mxu0 0
    %1344 = vmatpush2.bf16.msra.mxu0 %v1307
    %1345 = vmatprep.subr.bf16.mxu0 0
    %1346 = vmatpush2.bf16.msra.mxu0 %v1306
    %1347 = vmatprep.subr.bf16.mxu0 0
    %1348 = vmatpush2.bf16.msra.mxu0 %v1305
    %1349 = vmatprep.subr.bf16.mxu0 0
    %1350 = vmatpush2.bf16.msra.mxu0 %v1304
    %1351 = vmatprep.subr.bf16.mxu0 0
    %1352 = vmatpush2.bf16.msra.mxu0 %v1303
    %1353 = vmatprep.subr.bf16.mxu0 0
    %1354 = vmatpush2.bf16.msra.mxu0 %v1302
    %1355 = vmatprep.subr.bf16.mxu0 0
    %1356 = vmatpush2.bf16.msra.mxu0 %v1301
    %1357 = vmatprep.mubr.bf16.mxu0 %v1189
    %1358 = vmatmul.mubr.bf16.gmra.mxu0 %v1188
    %v1359 = vpop.f32.mrf.mxu0
    %v1360 = vadd.f32 %v1227, %v1359
    %v1361 = vpop.f32.mrf.mxu0
    %v1362 = vpop.f32.mrf.mxu0
    %v1363 = vpop.f32.mrf.mxu0
    %1364 = vdwg.mxu0
    %1365 = vst [vmem:[#allocation11] sm:$0xff] %v1360
    // Predicated region
    $region50: #{tpu_custom_call.1} parent=1 // pred_check
      _
    $region51: #{tpu_custom_call.1} parent=1 // pred_check_branch
      %1367 = sbr.rel (0) target = $region53
    $region52: #{tpu_custom_call.1} parent=1 // pred_region
      %s1369 = ssub.s32 128, 128
      %1370 = vsyncadd [#allocation4], %s1369
      %s1372 = sshll.u32 [#allocation11], 4
      %s1373 = int_to_ptr.vmem [resolvable:$true] %s1372
      %1375 = dma.vmem_to_hbm [thread:$0]  %s1373, 128, %s7, [#allocation4]
    $region53: #{tpu_custom_call.1} parent=1 // pred_fallthru
      _
    // Predicated region
    $region54: #{tpu_custom_call.1} parent=1 // pred_check
      _
    $region55: #{tpu_custom_call.1} parent=1 // pred_check_branch
      %1377 = sbr.rel (0) target = $region57
    $region56: #{tpu_custom_call.1} parent=1 // pred_region
      %1378 = dma.done [#allocation4], 128
    $region57: #{tpu_custom_call.1} parent=1 // pred_fallthru
      _
    %1379 = vsyncpa [#allocation3], 1
    %1380 = vsyncpa [#allocation6], 1
    %1381 = vsyncpa [#allocation9], 1
    %1382 = vsyncpa [#allocation4], 1

</llo_original>
